<compile_context>
chip_gen: v5e
topology: v5e:2x2
jax: 0.10.0
libtpu: 0.0.40
codegen_flags: <defaults>
</compile_context>

<pallas_src>
import jax
import jax.numpy as jnp
from jax.experimental import pallas as pl
from jax.experimental.pallas import tpu as pltpu


def _round_up(x, m):
    return (x + m - 1) // m * m


def _fused_mlp_kernel(*refs):
    # refs = (x_ref, w0, b0, w1, b1, ..., w{L-1}, b{L-1}, o_ref)
    x_ref, o_ref = refs[0], refs[-1]
    wb = refs[1:-1]
    n_layers = len(wb) // 2
    h = x_ref[...]
    for i in range(n_layers):
        w = wb[2 * i][...]
        b = wb[2 * i + 1][...]
        h = jnp.dot(h, w, preferred_element_type=jnp.float32) + b
        if i < n_layers - 1:          # final layer has no ReLU
            h = jnp.maximum(h, 0.0)
    o_ref[...] = h.astype(o_ref.dtype)


def mlp_forward(params, x, *, max_batch_tile=256):
    """Whole-MLP forward as a single fused Pallas TPU kernel."""
    n_layers = len(params)
    B, K = x.shape
    hidden = params[0][0].shape[1]
    out_dim = params[-1][0].shape[1]
    dtype = x.dtype
    itemsize = jnp.dtype(dtype).itemsize

    # Batch tile: multiple of 8 sublanes, up to max_batch_tile rows for MXU occupancy.
    tb = min(max_batch_tile, _round_up(B, 8))
    b_pad = _round_up(B, tb)
    k_pad = _round_up(K, 128)       # lane-dense first-layer K
    n_pad = _round_up(out_dim, 128)  # lane-dense stored output

    x_p = jnp.pad(x, ((0, b_pad - B), (0, k_pad - K)))

    inputs = [x_p]
    in_specs = [pl.BlockSpec((tb, k_pad), lambda i: (i, 0))]

    flops = 0
    bytes_accessed = x_p.size * itemsize
    for li, (w, b) in enumerate(params):
        fan_in, fan_out = w.shape
        flops += 2 * B * fan_in * fan_out
        if li == 0 and k_pad != fan_in:
            w = jnp.pad(w, ((0, k_pad - fan_in), (0, 0)))
        if li == n_layers - 1 and n_pad != fan_out:
            w = jnp.pad(w, ((0, 0), (0, n_pad - fan_out)))
            b = jnp.pad(b, (0, n_pad - fan_out))
        b2 = b.reshape(1, -1)
        inputs += [w, b2]
        # Full-array blocks with constant (0,0) index -> parameters stay VMEM-resident.
        in_specs += [
            pl.BlockSpec(w.shape, lambda i: (0, 0)),
            pl.BlockSpec(b2.shape, lambda i: (0, 0)),
        ]
        bytes_accessed += (w.size + b2.size) * itemsize

    out_shape = jax.ShapeDtypeStruct((b_pad, n_pad), dtype)
    out_specs = pl.BlockSpec((tb, n_pad), lambda i: (i, 0))
    bytes_accessed += b_pad * n_pad * itemsize

    # Explicit VMEM budget (v7x: 64 MiB physical / 32 MiB default scoped):
    # resident params + double-buffered x/out tiles + in-kernel activation temps.
    budget = sum(a.size * a.dtype.itemsize for a in inputs[1:])
    budget += 2 * (tb * k_pad + tb * n_pad) * itemsize
    budget += 4 * tb * hidden * 4
    vmem_limit = min(max(2 * budget, 8 << 20), 32 << 20)

    out = pl.pallas_call(
        _fused_mlp_kernel,
        out_shape=out_shape,
        grid=(b_pad // tb,),
        in_specs=in_specs,
        out_specs=out_specs,
        compiler_params=pltpu.CompilerParams(
            dimension_semantics=("parallel",),   # shard batch tiles across TCs (v7x)
            vmem_limit_bytes=vmem_limit,
        ),
        cost_estimate=pl.CostEstimate(
            flops=flops, transcendentals=0, bytes_accessed=bytes_accessed
        ),
    )(*inputs)
    return out[:B, :out_dim]


def init_mlp_params(key, depth, latent_dim, hidden_dim, output_dim):
    """Deterministic init mimicking PyTorch nn.Linear default U(-1/sqrt(in), 1/sqrt(in)).
    Weights stored (in, out) (transposed vs. PyTorch) so the kernel does x @ w directly."""
    dims = [latent_dim] + [hidden_dim] * (depth - 1) + [output_dim]
    params = []
    for i in range(depth):
        fan_in, fan_out = dims[i], dims[i + 1]
        key, kw, kb = jax.random.split(key, 3)
        bound = 1.0 / jnp.sqrt(jnp.float32(fan_in))
        w = jax.random.uniform(kw, (fan_in, fan_out), jnp.float32, -bound, bound)
        b = jax.random.uniform(kb, (fan_out,), jnp.float32, -bound, bound)
        params.append((w, b))
    return params


def mlp_reference(params, x):
    """Plain-JAX reference for correctness check."""
    n = len(params)
    h = x
    for i, (w, b) in enumerate(params):
        h = h @ w + b
        if i < n - 1:
            h = jnp.maximum(h, 0.0)
    return h


if __name__ == "__main__":
    depth = 6
    latent_dim = 32
    hidden_dim = 256
    output_dim = 16
    batch = 8

    key = jax.random.PRNGKey(0)
    key, kx = jax.random.split(key)
    x = jax.random.normal(kx, (batch, latent_dim), jnp.float32)
    params = init_mlp_params(key, depth, latent_dim, hidden_dim, output_dim)

    out = mlp_forward(params, x)
    out = jax.block_until_ready(out)

    ref = mlp_reference(params, x)
    assert out.shape == (batch, output_dim)
    assert jnp.allclose(out, ref, atol=1e-4, rtol=1e-4), "mismatch vs reference"

    print("KERNEL_OK")
</pallas_src>

<mosaic_0001>
module attributes {stable_mosaic.version = 11 : i64} {
  func.func @_fused_mlp_kernel(%arg0: i32, %arg1: memref<8x128xf32, #tpu.memory_space<vmem>>, %arg2: memref<128x256xf32, #tpu.memory_space<vmem>>, %arg3: memref<1x256xf32, #tpu.memory_space<vmem>>, %arg4: memref<256x256xf32, #tpu.memory_space<vmem>>, %arg5: memref<1x256xf32, #tpu.memory_space<vmem>>, %arg6: memref<256x256xf32, #tpu.memory_space<vmem>>, %arg7: memref<1x256xf32, #tpu.memory_space<vmem>>, %arg8: memref<256x256xf32, #tpu.memory_space<vmem>>, %arg9: memref<1x256xf32, #tpu.memory_space<vmem>>, %arg10: memref<256x256xf32, #tpu.memory_space<vmem>>, %arg11: memref<1x256xf32, #tpu.memory_space<vmem>>, %arg12: memref<256x128xf32, #tpu.memory_space<vmem>>, %arg13: memref<1x128xf32, #tpu.memory_space<vmem>>, %arg14: memref<8x128xf32, #tpu.memory_space<vmem>>) attributes {dimension_semantics = [#tpu.dimension_semantics<parallel>], iteration_bounds = array<i64: 1>, scalar_prefetch = 0 : i64, scratch_operands = 0 : i64, tpu.core_type = #tpu.core_type<tc>, window_params = [{transform_indices = @transform_0, window_bounds = array<i64: 8, 128>}, {pipeline_mode = #tpu.pipeline_mode<synchronous>, transform_indices = @transform_1, window_bounds = array<i64: 128, 256>}, {pipeline_mode = #tpu.pipeline_mode<synchronous>, transform_indices = @transform_2, window_bounds = array<i64: 1, 256>}, {pipeline_mode = #tpu.pipeline_mode<synchronous>, transform_indices = @transform_3, window_bounds = array<i64: 256, 256>}, {pipeline_mode = #tpu.pipeline_mode<synchronous>, transform_indices = @transform_4, window_bounds = array<i64: 1, 256>}, {pipeline_mode = #tpu.pipeline_mode<synchronous>, transform_indices = @transform_5, window_bounds = array<i64: 256, 256>}, {pipeline_mode = #tpu.pipeline_mode<synchronous>, transform_indices = @transform_6, window_bounds = array<i64: 1, 256>}, {pipeline_mode = #tpu.pipeline_mode<synchronous>, transform_indices = @transform_7, window_bounds = array<i64: 256, 256>}, {pipeline_mode = #tpu.pipeline_mode<synchronous>, transform_indices = @transform_8, window_bounds = array<i64: 1, 256>}, {pipeline_mode = #tpu.pipeline_mode<synchronous>, transform_indices = @transform_9, window_bounds = array<i64: 256, 256>}, {pipeline_mode = #tpu.pipeline_mode<synchronous>, transform_indices = @transform_10, window_bounds = array<i64: 1, 256>}, {pipeline_mode = #tpu.pipeline_mode<synchronous>, transform_indices = @transform_11, window_bounds = array<i64: 256, 128>}, {pipeline_mode = #tpu.pipeline_mode<synchronous>, transform_indices = @transform_12, window_bounds = array<i64: 1, 128>}, {transform_indices = @transform_13, window_bounds = array<i64: 8, 128>}]} {
    %c0 = arith.constant 0 : index
    %c0_0 = arith.constant 0 : index
    %0 = vector.load %arg1[%c0, %c0_0] : memref<8x128xf32, #tpu.memory_space<vmem>>, vector<8x128xf32>
    %c0_1 = arith.constant 0 : index
    %c0_2 = arith.constant 0 : index
    %1 = vector.load %arg2[%c0_1, %c0_2] : memref<128x256xf32, #tpu.memory_space<vmem>>, vector<128x256xf32>
    %c0_3 = arith.constant 0 : index
    %c0_4 = arith.constant 0 : index
    %2 = vector.load %arg3[%c0_3, %c0_4] : memref<1x256xf32, #tpu.memory_space<vmem>>, vector<1x256xf32>
    %cst = arith.constant dense<0.000000e+00> : vector<8x256xf32>
    %3 = tpu.matmul %0, %1, %cst {dimension_numbers = #tpu.dot_dimension_numbers<[1], [0], [0], [1], [0, 0, 1, 1], [], []>} : vector<8x128xf32>, vector<128x256xf32>, vector<8x256xf32> -> vector<8x256xf32>
    %4 = vector.broadcast %2 : vector<1x256xf32> to vector<8x256xf32>
    %5 = arith.addf %3, %4 : vector<8x256xf32>
    %cst_5 = arith.constant 0.000000e+00 : f32
    %6 = vector.broadcast %cst_5 : f32 to vector<8x256xf32>
    %7 = arith.maximumf %5, %6 : vector<8x256xf32>
    %c0_6 = arith.constant 0 : index
    %c0_7 = arith.constant 0 : index
    %8 = vector.load %arg4[%c0_6, %c0_7] : memref<256x256xf32, #tpu.memory_space<vmem>>, vector<256x256xf32>
    %c0_8 = arith.constant 0 : index
    %c0_9 = arith.constant 0 : index
    %9 = vector.load %arg5[%c0_8, %c0_9] : memref<1x256xf32, #tpu.memory_space<vmem>>, vector<1x256xf32>
    %cst_10 = arith.constant dense<0.000000e+00> : vector<8x256xf32>
    %10 = tpu.matmul %7, %8, %cst_10 {dimension_numbers = #tpu.dot_dimension_numbers<[1], [0], [0], [1], [0, 0, 1, 1], [], []>} : vector<8x256xf32>, vector<256x256xf32>, vector<8x256xf32> -> vector<8x256xf32>
    %11 = vector.broadcast %9 : vector<1x256xf32> to vector<8x256xf32>
    %12 = arith.addf %10, %11 : vector<8x256xf32>
    %cst_11 = arith.constant 0.000000e+00 : f32
    %13 = vector.broadcast %cst_11 : f32 to vector<8x256xf32>
    %14 = arith.maximumf %12, %13 : vector<8x256xf32>
    %c0_12 = arith.constant 0 : index
    %c0_13 = arith.constant 0 : index
    %15 = vector.load %arg6[%c0_12, %c0_13] : memref<256x256xf32, #tpu.memory_space<vmem>>, vector<256x256xf32>
    %c0_14 = arith.constant 0 : index
    %c0_15 = arith.constant 0 : index
    %16 = vector.load %arg7[%c0_14, %c0_15] : memref<1x256xf32, #tpu.memory_space<vmem>>, vector<1x256xf32>
    %cst_16 = arith.constant dense<0.000000e+00> : vector<8x256xf32>
    %17 = tpu.matmul %14, %15, %cst_16 {dimension_numbers = #tpu.dot_dimension_numbers<[1], [0], [0], [1], [0, 0, 1, 1], [], []>} : vector<8x256xf32>, vector<256x256xf32>, vector<8x256xf32> -> vector<8x256xf32>
    %18 = vector.broadcast %16 : vector<1x256xf32> to vector<8x256xf32>
    %19 = arith.addf %17, %18 : vector<8x256xf32>
    %cst_17 = arith.constant 0.000000e+00 : f32
    %20 = vector.broadcast %cst_17 : f32 to vector<8x256xf32>
    %21 = arith.maximumf %19, %20 : vector<8x256xf32>
    %c0_18 = arith.constant 0 : index
    %c0_19 = arith.constant 0 : index
    %22 = vector.load %arg8[%c0_18, %c0_19] : memref<256x256xf32, #tpu.memory_space<vmem>>, vector<256x256xf32>
    %c0_20 = arith.constant 0 : index
    %c0_21 = arith.constant 0 : index
    %23 = vector.load %arg9[%c0_20, %c0_21] : memref<1x256xf32, #tpu.memory_space<vmem>>, vector<1x256xf32>
    %cst_22 = arith.constant dense<0.000000e+00> : vector<8x256xf32>
    %24 = tpu.matmul %21, %22, %cst_22 {dimension_numbers = #tpu.dot_dimension_numbers<[1], [0], [0], [1], [0, 0, 1, 1], [], []>} : vector<8x256xf32>, vector<256x256xf32>, vector<8x256xf32> -> vector<8x256xf32>
    %25 = vector.broadcast %23 : vector<1x256xf32> to vector<8x256xf32>
    %26 = arith.addf %24, %25 : vector<8x256xf32>
    %cst_23 = arith.constant 0.000000e+00 : f32
    %27 = vector.broadcast %cst_23 : f32 to vector<8x256xf32>
    %28 = arith.maximumf %26, %27 : vector<8x256xf32>
    %c0_24 = arith.constant 0 : index
    %c0_25 = arith.constant 0 : index
    %29 = vector.load %arg10[%c0_24, %c0_25] : memref<256x256xf32, #tpu.memory_space<vmem>>, vector<256x256xf32>
    %c0_26 = arith.constant 0 : index
    %c0_27 = arith.constant 0 : index
    %30 = vector.load %arg11[%c0_26, %c0_27] : memref<1x256xf32, #tpu.memory_space<vmem>>, vector<1x256xf32>
    %cst_28 = arith.constant dense<0.000000e+00> : vector<8x256xf32>
    %31 = tpu.matmul %28, %29, %cst_28 {dimension_numbers = #tpu.dot_dimension_numbers<[1], [0], [0], [1], [0, 0, 1, 1], [], []>} : vector<8x256xf32>, vector<256x256xf32>, vector<8x256xf32> -> vector<8x256xf32>
    %32 = vector.broadcast %30 : vector<1x256xf32> to vector<8x256xf32>
    %33 = arith.addf %31, %32 : vector<8x256xf32>
    %cst_29 = arith.constant 0.000000e+00 : f32
    %34 = vector.broadcast %cst_29 : f32 to vector<8x256xf32>
    %35 = arith.maximumf %33, %34 : vector<8x256xf32>
    %c0_30 = arith.constant 0 : index
    %c0_31 = arith.constant 0 : index
    %36 = vector.load %arg12[%c0_30, %c0_31] : memref<256x128xf32, #tpu.memory_space<vmem>>, vector<256x128xf32>
    %c0_32 = arith.constant 0 : index
    %c0_33 = arith.constant 0 : index
    %37 = vector.load %arg13[%c0_32, %c0_33] : memref<1x128xf32, #tpu.memory_space<vmem>>, vector<1x128xf32>
    %cst_34 = arith.constant dense<0.000000e+00> : vector<8x128xf32>
    %38 = tpu.matmul %35, %36, %cst_34 {dimension_numbers = #tpu.dot_dimension_numbers<[1], [0], [0], [1], [0, 0, 1, 1], [], []>} : vector<8x256xf32>, vector<256x128xf32>, vector<8x128xf32> -> vector<8x128xf32>
    %39 = vector.broadcast %37 : vector<1x128xf32> to vector<8x128xf32>
    %40 = arith.addf %38, %39 : vector<8x128xf32>
    %c0_35 = arith.constant 0 : index
    %c0_36 = arith.constant 0 : index
    %41 = vector.load %arg14[%c0_35, %c0_36] : memref<8x128xf32, #tpu.memory_space<vmem>>, vector<8x128xf32>
    tpu.vector_store %arg14[%c0_35, %c0_36], %40 {strides = array<i32>} : memref<8x128xf32, #tpu.memory_space<vmem>>, vector<8x128xf32>,
    return
  }
  func.func @transform_0(%arg0: i32) -> (i32, i32) {
    %c0_i32 = arith.constant 0 : i32
    %c0_i32_0 = arith.constant 0 : i32
    return %arg0, %c0_i32 : i32, i32
  }
  func.func @transform_1(%arg0: i32) -> (i32, i32) {
    %c0_i32 = arith.constant 0 : i32
    %c0_i32_0 = arith.constant 0 : i32
    %c0_i32_1 = arith.constant 0 : i32
    return %c0_i32, %c0_i32_0 : i32, i32
  }
  func.func @transform_2(%arg0: i32) -> (i32, i32) {
    %c0_i32 = arith.constant 0 : i32
    %c0_i32_0 = arith.constant 0 : i32
    %c0_i32_1 = arith.constant 0 : i32
    return %c0_i32, %c0_i32_0 : i32, i32
  }
  func.func @transform_3(%arg0: i32) -> (i32, i32) {
    %c0_i32 = arith.constant 0 : i32
    %c0_i32_0 = arith.constant 0 : i32
    %c0_i32_1 = arith.constant 0 : i32
    return %c0_i32, %c0_i32_0 : i32, i32
  }
  func.func @transform_4(%arg0: i32) -> (i32, i32) {
    %c0_i32 = arith.constant 0 : i32
    %c0_i32_0 = arith.constant 0 : i32
    %c0_i32_1 = arith.constant 0 : i32
    return %c0_i32, %c0_i32_0 : i32, i32
  }
  func.func @transform_5(%arg0: i32) -> (i32, i32) {
    %c0_i32 = arith.constant 0 : i32
    %c0_i32_0 = arith.constant 0 : i32
    %c0_i32_1 = arith.constant 0 : i32
    return %c0_i32, %c0_i32_0 : i32, i32
  }
  func.func @transform_6(%arg0: i32) -> (i32, i32) {
    %c0_i32 = arith.constant 0 : i32
    %c0_i32_0 = arith.constant 0 : i32
    %c0_i32_1 = arith.constant 0 : i32
    return %c0_i32, %c0_i32_0 : i32, i32
  }
  func.func @transform_7(%arg0: i32) -> (i32, i32) {
    %c0_i32 = arith.constant 0 : i32
    %c0_i32_0 = arith.constant 0 : i32
    %c0_i32_1 = arith.constant 0 : i32
    return %c0_i32, %c0_i32_0 : i32, i32
  }
  func.func @transform_8(%arg0: i32) -> (i32, i32) {
    %c0_i32 = arith.constant 0 : i32
    %c0_i32_0 = arith.constant 0 : i32
    %c0_i32_1 = arith.constant 0 : i32
    return %c0_i32, %c0_i32_0 : i32, i32
  }
  func.func @transform_9(%arg0: i32) -> (i32, i32) {
    %c0_i32 = arith.constant 0 : i32
    %c0_i32_0 = arith.constant 0 : i32
    %c0_i32_1 = arith.constant 0 : i32
    return %c0_i32, %c0_i32_0 : i32, i32
  }
  func.func @transform_10(%arg0: i32) -> (i32, i32) {
    %c0_i32 = arith.constant 0 : i32
    %c0_i32_0 = arith.constant 0 : i32
    %c0_i32_1 = arith.constant 0 : i32
    return %c0_i32, %c0_i32_0 : i32, i32
  }
  func.func @transform_11(%arg0: i32) -> (i32, i32) {
    %c0_i32 = arith.constant 0 : i32
    %c0_i32_0 = arith.constant 0 : i32
    %c0_i32_1 = arith.constant 0 : i32
    return %c0_i32, %c0_i32_0 : i32, i32
  }
  func.func @transform_12(%arg0: i32) -> (i32, i32) {
    %c0_i32 = arith.constant 0 : i32
    %c0_i32_0 = arith.constant 0 : i32
    %c0_i32_1 = arith.constant 0 : i32
    return %c0_i32, %c0_i32_0 : i32, i32
  }
  func.func @transform_13(%arg0: i32) -> (i32, i32) {
    %c0_i32 = arith.constant 0 : i32
    %c0_i32_0 = arith.constant 0 : i32
    return %arg0, %c0_i32 : i32, i32
  }
}

</mosaic_0001>

<llo_original>
// kernel: tpu_custom_call.1
$region0: #{tpu_custom_call.1}
  #allocation0 [shape = 'u32[]', space=smem, size = 0x4, offset = 0x4, fixed_abs, tag = 'smem constant byte address 0x4 - core index']
  #allocation1 [shape = 'u32[72,128]{1,0:T(1,128)}', space=vmem, size = 0x9000, scoped, tag = 'internal scratch']
  %s0 = inlined_call_operand.hbm [shape: f32[8,128], index: 0, kind: input, shape index: {}]
  %s1 = inlined_call_operand.hbm [shape: f32[128,256], index: 1, kind: input, shape index: {}]
  %s2 = inlined_call_operand.hbm [shape: f32[1,256], index: 2, kind: input, shape index: {}]
  %s3 = inlined_call_operand.hbm [shape: f32[256,256], index: 3, kind: input, shape index: {}]
  %s4 = inlined_call_operand.vmem [shape: f32[1,256], index: 4, kind: input, shape index: {}]
  %s5 = inlined_call_operand.hbm [shape: f32[256,256], index: 5, kind: input, shape index: {}]
  %s6 = inlined_call_operand.vmem [shape: f32[1,256], index: 6, kind: input, shape index: {}]
  %s7 = inlined_call_operand.hbm [shape: f32[256,256], index: 7, kind: input, shape index: {}]
  %s8 = inlined_call_operand.vmem [shape: f32[1,256], index: 8, kind: input, shape index: {}]
  %s9 = inlined_call_operand.hbm [shape: f32[256,256], index: 9, kind: input, shape index: {}]
  %s10 = inlined_call_operand.vmem [shape: f32[1,256], index: 10, kind: input, shape index: {}]
  %s11 = inlined_call_operand.hbm [shape: f32[256,128], index: 11, kind: input, shape index: {}]
  %s12 = inlined_call_operand.vmem [shape: f32[1,128], index: 12, kind: input, shape index: {}]
  %s13 = inlined_call_operand.hbm [shape: f32[8,128], index: 13, kind: output, shape index: {}]
  %s14 = sld [smem:[#allocation0]]
  $region94: #{tpu_custom_call.1} parent=0
    _
  %s16 = ssub.s32 1, %s14
  %s17 = scalar_select 0, %s16, %s14
  $region1: #{tpu_custom_call.1} parent=0
    #allocation2 [shape = 'u8[4096]{0}', space=vmem, size = 0x1000, scoped, tag = 'input window, operand 0, single buffered']
    #allocation3 [shape = 's32[1]{0}', space=sflag, size = 0x4, scoped, tag = 'scoped memory for tpu_custom_call.1']
    #allocation4 [shape = 's32[1]{0}', space=sflag, size = 0x4, scoped, tag = 'scoped memory for tpu_custom_call.1']
    #allocation5 [shape = 'u8[131072]{0}', space=vmem, size = 0x20000, scoped, tag = 'input window, operand 1, single buffered']
    #allocation6 [shape = 's32[1]{0}', space=sflag, size = 0x4, scoped, tag = 'scoped memory for tpu_custom_call.1']
    #allocation7 [shape = 'u8[1024]{0}', space=vmem, size = 0x400, scoped, tag = 'input window, operand 2, single buffered']
    #allocation8 [shape = 'u8[262144]{0}', space=vmem, size = 0x40000, scoped, tag = 'input window, operand 3, single buffered']
    #allocation9 [shape = 's32[1]{0}', space=sflag, size = 0x4, scoped, tag = 'scoped memory for tpu_custom_call.1']
    #allocation10 [shape = 'u8[262144]{0}', space=vmem, size = 0x40000, scoped, tag = 'input window, operand 5, single buffered']
    #allocation11 [shape = 'u8[262144]{0}', space=vmem, size = 0x40000, scoped, tag = 'input window, operand 7, single buffered']
    #allocation12 [shape = 's32[1]{0}', space=sflag, size = 0x4, scoped, tag = 'scoped memory for tpu_custom_call.1']
    #allocation13 [shape = 'u8[262144]{0}', space=vmem, size = 0x40000, scoped, tag = 'input window, operand 9, single buffered']
    #allocation14 [shape = 'u8[131072]{0}', space=vmem, size = 0x20000, scoped, tag = 'input window, operand 11, single buffered']
    #allocation15 [shape = 's32[1]{0}', space=sflag, size = 0x4, scoped, tag = 'scoped memory for tpu_custom_call.1']
    #allocation16 [shape = 'u8[4096]{0}', space=vmem, size = 0x1000, scoped, tag = 'output window, operand 0, single buffered']
    %18 = vsyncpa [#allocation3], 0
    %19 = vsyncpa [#allocation6], 0
    %20 = vsyncpa [#allocation9], 0
    %21 = vsyncpa [#allocation12], 0
    %22 = vsyncpa [#allocation15], 0
    %23 = vsyncpa [#allocation4], 0
    // Predicated region
    $region2: #{tpu_custom_call.1} parent=1 // pred_check
      _
    $region3: #{tpu_custom_call.1} parent=1 // pred_check_branch
      %25 = sbr.rel (0) target = $region5
    $region4: #{tpu_custom_call.1} parent=1 // pred_region
      %27 = vsyncadd [#allocation3], 0
      %s29 = sshll.u32 %s0, 4
      %s30 = int_to_ptr.hbm [resolvable:$true] %s29
      %s31 = sshll.u32 [#allocation2], 4
      %s32 = int_to_ptr.vmem [resolvable:$true] %s31
      %34 = dma.hbm_to_vmem [thread:$0]  %s30, 128, %s32, [#allocation3]
    $region5: #{tpu_custom_call.1} parent=1 // pred_fallthru
      _
    // Predicated region
    $region6: #{tpu_custom_call.1} parent=1 // pred_check
      _
    $region7: #{tpu_custom_call.1} parent=1 // pred_check_branch
      %36 = sbr.rel (0) target = $region9
    $region8: #{tpu_custom_call.1} parent=1 // pred_region
      %38 = vsyncadd [#allocation6], 0
      %s39 = sshll.u32 %s1, 4
      %s40 = int_to_ptr.hbm [resolvable:$true] %s39
      %s41 = sshll.u32 [#allocation5], 4
      %s42 = int_to_ptr.vmem [resolvable:$true] %s41
      %47 = dma.hbm_to_vmem [thread:$0]  %s40, 4096, %s42, [#allocation6], 256, 256, 16
    $region9: #{tpu_custom_call.1} parent=1 // pred_fallthru
      _
    // Predicated region
    $region10: #{tpu_custom_call.1} parent=1 // pred_check
      _
    $region11: #{tpu_custom_call.1} parent=1 // pred_check_branch
      %49 = sbr.rel (0) target = $region13
    $region12: #{tpu_custom_call.1} parent=1 // pred_region
      %51 = vsyncadd [#allocation6], 0
      %s53 = sshll.u32 %s2, 4
      %s54 = int_to_ptr.hbm [resolvable:$true] %s53
      %s55 = sshll.u32 [#allocation7], 4
      %s56 = int_to_ptr.vmem [resolvable:$true] %s55
      %58 = dma.hbm_to_vmem [thread:$0]  %s54, 32, %s56, [#allocation6]
    $region13: #{tpu_custom_call.1} parent=1 // pred_fallthru
      _
    // Predicated region
    $region14: #{tpu_custom_call.1} parent=1 // pred_check
      _
    $region15: #{tpu_custom_call.1} parent=1 // pred_check_branch
      %60 = sbr.rel (0) target = $region17
    $region16: #{tpu_custom_call.1} parent=1 // pred_region
      %62 = vsyncadd [#allocation9], 0
      %s63 = sshll.u32 %s3, 4
      %s64 = int_to_ptr.hbm [resolvable:$true] %s63
      %s65 = sshll.u32 [#allocation8], 4
      %s66 = int_to_ptr.vmem [resolvable:$true] %s65
      %71 = dma.hbm_to_vmem [thread:$0]  %s64, 8192, %s66, [#allocation9], 256, 256, 16
    $region17: #{tpu_custom_call.1} parent=1 // pred_fallthru
      _
    // Predicated region
    $region18: #{tpu_custom_call.1} parent=1 // pred_check
      _
    $region19: #{tpu_custom_call.1} parent=1 // pred_check_branch
      %73 = sbr.rel (0) target = $region21
    $region20: #{tpu_custom_call.1} parent=1 // pred_region
      _
    $region21: #{tpu_custom_call.1} parent=1 // pred_fallthru
      _
    // Predicated region
    $region22: #{tpu_custom_call.1} parent=1 // pred_check
      _
    $region23: #{tpu_custom_call.1} parent=1 // pred_check_branch
      %75 = sbr.rel (0) target = $region25
    $region24: #{tpu_custom_call.1} parent=1 // pred_region
      %77 = vsyncadd [#allocation9], 0
      %s78 = sshll.u32 %s5, 4
      %s79 = int_to_ptr.hbm [resolvable:$true] %s78
      %s80 = sshll.u32 [#allocation10], 4
      %s81 = int_to_ptr.vmem [resolvable:$true] %s80
      %86 = dma.hbm_to_vmem [thread:$0]  %s79, 8192, %s81, [#allocation9], 256, 256, 16
    $region25: #{tpu_custom_call.1} parent=1 // pred_fallthru
      _
    // Predicated region
    $region26: #{tpu_custom_call.1} parent=1 // pred_check
      _
    $region27: #{tpu_custom_call.1} parent=1 // pred_check_branch
      %88 = sbr.rel (0) target = $region29
    $region28: #{tpu_custom_call.1} parent=1 // pred_region
      _
    $region29: #{tpu_custom_call.1} parent=1 // pred_fallthru
      _
    // Predicated region
    $region30: #{tpu_custom_call.1} parent=1 // pred_check
      _
    $region31: #{tpu_custom_call.1} parent=1 // pred_check_branch
      %90 = sbr.rel (0) target = $region33
    $region32: #{tpu_custom_call.1} parent=1 // pred_region
      %92 = vsyncadd [#allocation12], 0
      %s93 = sshll.u32 %s7, 4
      %s94 = int_to_ptr.hbm [resolvable:$true] %s93
      %s95 = sshll.u32 [#allocation11], 4
      %s96 = int_to_ptr.vmem [resolvable:$true] %s95
      %101 = dma.hbm_to_vmem [thread:$0]  %s94, 8192, %s96, [#allocation12], 256, 256, 16
    $region33: #{tpu_custom_call.1} parent=1 // pred_fallthru
      _
    // Predicated region
    $region34: #{tpu_custom_call.1} parent=1 // pred_check
      _
    $region35: #{tpu_custom_call.1} parent=1 // pred_check_branch
      %103 = sbr.rel (0) target = $region37
    $region36: #{tpu_custom_call.1} parent=1 // pred_region
      _
    $region37: #{tpu_custom_call.1} parent=1 // pred_fallthru
      _
    // Predicated region
    $region38: #{tpu_custom_call.1} parent=1 // pred_check
      _
    $region39: #{tpu_custom_call.1} parent=1 // pred_check_branch
      %105 = sbr.rel (0) target = $region41
    $region40: #{tpu_custom_call.1} parent=1 // pred_region
      %107 = vsyncadd [#allocation12], 0
      %s108 = sshll.u32 %s9, 4
      %s109 = int_to_ptr.hbm [resolvable:$true] %s108
      %s110 = sshll.u32 [#allocation13], 4
      %s111 = int_to_ptr.vmem [resolvable:$true] %s110
      %116 = dma.hbm_to_vmem [thread:$0]  %s109, 8192, %s111, [#allocation12], 256, 256, 16
    $region41: #{tpu_custom_call.1} parent=1 // pred_fallthru
      _
    // Predicated region
    $region42: #{tpu_custom_call.1} parent=1 // pred_check
      _
    $region43: #{tpu_custom_call.1} parent=1 // pred_check_branch
      %118 = sbr.rel (0) target = $region45
    $region44: #{tpu_custom_call.1} parent=1 // pred_region
      _
    $region45: #{tpu_custom_call.1} parent=1 // pred_fallthru
      _
    // Predicated region
    $region46: #{tpu_custom_call.1} parent=1 // pred_check
      _
    $region47: #{tpu_custom_call.1} parent=1 // pred_check_branch
      %120 = sbr.rel (0) target = $region49
    $region48: #{tpu_custom_call.1} parent=1 // pred_region
      %122 = vsyncadd [#allocation15], 0
      %s123 = sshll.u32 %s11, 4
      %s124 = int_to_ptr.hbm [resolvable:$true] %s123
      %s125 = sshll.u32 [#allocation14], 4
      %s126 = int_to_ptr.vmem [resolvable:$true] %s125
      %131 = dma.hbm_to_vmem [thread:$0]  %s124, 4096, %s126, [#allocation15], 128, 128, 8
    $region49: #{tpu_custom_call.1} parent=1 // pred_fallthru
      _
    // Predicated region
    $region50: #{tpu_custom_call.1} parent=1 // pred_check
      _
    $region51: #{tpu_custom_call.1} parent=1 // pred_check_branch
      %133 = sbr.rel (0) target = $region53
    $region52: #{tpu_custom_call.1} parent=1 // pred_region
      _
    $region53: #{tpu_custom_call.1} parent=1 // pred_fallthru
      _
    // Predicated region
    $region54: #{tpu_custom_call.1} parent=1 // pred_check
      _
    $region55: #{tpu_custom_call.1} parent=1 // pred_check_branch
      %135 = sbr.rel (0) target = $region57
    $region56: #{tpu_custom_call.1} parent=1 // pred_region
      %137 = dma.done [#allocation3], 128
    $region57: #{tpu_custom_call.1} parent=1 // pred_fallthru
      _
    // Predicated region
    $region58: #{tpu_custom_call.1} parent=1 // pred_check
      _
    $region59: #{tpu_custom_call.1} parent=1 // pred_check_branch
      %139 = sbr.rel (0) target = $region61
    $region60: #{tpu_custom_call.1} parent=1 // pred_region
      %141 = dma.done [#allocation6], 4096
    $region61: #{tpu_custom_call.1} parent=1 // pred_fallthru
      _
    // Predicated region
    $region62: #{tpu_custom_call.1} parent=1 // pred_check
      _
    $region63: #{tpu_custom_call.1} parent=1 // pred_check_branch
      %143 = sbr.rel (0) target = $region65
    $region64: #{tpu_custom_call.1} parent=1 // pred_region
      %145 = dma.done [#allocation6], 32
    $region65: #{tpu_custom_call.1} parent=1 // pred_fallthru
      _
    // Predicated region
    $region66: #{tpu_custom_call.1} parent=1 // pred_check
      _
    $region67: #{tpu_custom_call.1} parent=1 // pred_check_branch
      %147 = sbr.rel (0) target = $region69
    $region68: #{tpu_custom_call.1} parent=1 // pred_region
      %149 = dma.done [#allocation9], 8192
    $region69: #{tpu_custom_call.1} parent=1 // pred_fallthru
      _
    // Predicated region
    $region70: #{tpu_custom_call.1} parent=1 // pred_check
      _
    $region71: #{tpu_custom_call.1} parent=1 // pred_check_branch
      %151 = sbr.rel (0) target = $region73
    $region72: #{tpu_custom_call.1} parent=1 // pred_region
      %153 = dma.done [#allocation9], 8192
    $region73: #{tpu_custom_call.1} parent=1 // pred_fallthru
      _
    // Predicated region
    $region74: #{tpu_custom_call.1} parent=1 // pred_check
      _
    $region75: #{tpu_custom_call.1} parent=1 // pred_check_branch
      %155 = sbr.rel (0) target = $region77
    $region76: #{tpu_custom_call.1} parent=1 // pred_region
      %157 = dma.done [#allocation12], 8192
    $region77: #{tpu_custom_call.1} parent=1 // pred_fallthru
      _
    // Predicated region
    $region78: #{tpu_custom_call.1} parent=1 // pred_check
      _
    $region79: #{tpu_custom_call.1} parent=1 // pred_check_branch
      %159 = sbr.rel (0) target = $region81
    $region80: #{tpu_custom_call.1} parent=1 // pred_region
      %161 = dma.done [#allocation12], 8192
    $region81: #{tpu_custom_call.1} parent=1 // pred_fallthru
      _
    // Predicated region
    $region82: #{tpu_custom_call.1} parent=1 // pred_check
      _
    $region83: #{tpu_custom_call.1} parent=1 // pred_check_branch
      %163 = sbr.rel (0) target = $region85
    $region84: #{tpu_custom_call.1} parent=1 // pred_region
      %165 = dma.done [#allocation15], 4096
    $region85: #{tpu_custom_call.1} parent=1 // pred_fallthru
      _
    %v166 = vld [vmem:[#allocation2] sm:$0xff]
    %v167 = vld [vmem:[#allocation5] sm:$0xff]
    %v168 = vld [vmem:[#allocation5 + $0x8] sm:$0xff]
    %v169 = vld [vmem:[#allocation5 + $0x10] sm:$0xff]
    %v170 = vld [vmem:[#allocation5 + $0x18] sm:$0xff]
    %v171 = vld [vmem:[#allocation5 + $0x20] sm:$0xff]
    %v172 = vld [vmem:[#allocation5 + $0x28] sm:$0xff]
    %v173 = vld [vmem:[#allocation5 + $0x30] sm:$0xff]
    %v174 = vld [vmem:[#allocation5 + $0x38] sm:$0xff]
    %v175 = vld [vmem:[#allocation5 + $0x40] sm:$0xff]
    %v176 = vld [vmem:[#allocation5 + $0x48] sm:$0xff]
    %v177 = vld [vmem:[#allocation5 + $0x50] sm:$0xff]
    %v178 = vld [vmem:[#allocation5 + $0x58] sm:$0xff]
    %v179 = vld [vmem:[#allocation5 + $0x60] sm:$0xff]
    %v180 = vld [vmem:[#allocation5 + $0x68] sm:$0xff]
    %v181 = vld [vmem:[#allocation5 + $0x70] sm:$0xff]
    %v182 = vld [vmem:[#allocation5 + $0x78] sm:$0xff]
    %v183 = vld [vmem:[#allocation5 + $0x80] sm:$0xff]
    %v184 = vld [vmem:[#allocation5 + $0x88] sm:$0xff]
    %v185 = vld [vmem:[#allocation5 + $0x90] sm:$0xff]
    %v186 = vld [vmem:[#allocation5 + $0x98] sm:$0xff]
    %v187 = vld [vmem:[#allocation5 + $0xa0] sm:$0xff]
    %v188 = vld [vmem:[#allocation5 + $0xa8] sm:$0xff]
    %v189 = vld [vmem:[#allocation5 + $0xb0] sm:$0xff]
    %v190 = vld [vmem:[#allocation5 + $0xb8] sm:$0xff]
    %v191 = vld [vmem:[#allocation5 + $0xc0] sm:$0xff]
    %v192 = vld [vmem:[#allocation5 + $0xc8] sm:$0xff]
    %v193 = vld [vmem:[#allocation5 + $0xd0] sm:$0xff]
    %v194 = vld [vmem:[#allocation5 + $0xd8] sm:$0xff]
    %v195 = vld [vmem:[#allocation5 + $0xe0] sm:$0xff]
    %v196 = vld [vmem:[#allocation5 + $0xe8] sm:$0xff]
    %v197 = vld [vmem:[#allocation5 + $0xf0] sm:$0xff]
    %v198 = vld [vmem:[#allocation5 + $0xf8] sm:$0xff]
    %v199 = vld [vmem:[#allocation7] sm:$0x3]
    %v201 = vperm.slane %v199, 0
    %v202 = vperm.slane %v199, 1
    %205 = vmatpush.msra.mxu0 %v197
    %206 = vmatpush.msra.mxu0 %v195
    %207 = vmatpush.msra.mxu0 %v193
    %208 = vmatpush.msra.mxu0 %v191
    %209 = vmatpush.msra.mxu0 %v189
    %210 = vmatpush.msra.mxu0 %v187
    %211 = vmatpush.msra.mxu0 %v185
    %212 = vmatpush.msra.mxu0 %v183
    %213 = vmatpush.msra.mxu0 %v181
    %214 = vmatpush.msra.mxu0 %v179
    %215 = vmatpush.msra.mxu0 %v177
    %216 = vmatpush.msra.mxu0 %v175
    %217 = vmatpush.msra.mxu0 %v173
    %218 = vmatpush.msra.mxu0 %v171
    %219 = vmatpush.msra.mxu0 %v169
    %220 = vmatpush.msra.mxu0 %v167
    %221 = vmatmul.f32.gmra.mxu0 %v166
    %v222 = vpop.f32.mrf.mxu0
    %v223 = vadd.f32 %v201, %v222
    %224 = vdwg.mxu0
    %225 = vmatpush.msra.mxu0 %v198
    %226 = vmatpush.msra.mxu0 %v196
    %227 = vmatpush.msra.mxu0 %v194
    %228 = vmatpush.msra.mxu0 %v192
    %229 = vmatpush.msra.mxu0 %v190
    %230 = vmatpush.msra.mxu0 %v188
    %231 = vmatpush.msra.mxu0 %v186
    %232 = vmatpush.msra.mxu0 %v184
    %233 = vmatpush.msra.mxu0 %v182
    %234 = vmatpush.msra.mxu0 %v180
    %235 = vmatpush.msra.mxu0 %v178
    %236 = vmatpush.msra.mxu0 %v176
    %237 = vmatpush.msra.mxu0 %v174
    %238 = vmatpush.msra.mxu0 %v172
    %239 = vmatpush.msra.mxu0 %v170
    %240 = vmatpush.msra.mxu0 %v168
    %241 = vmatmul.f32.gmra.mxu0 %v166
    %v242 = vpop.f32.mrf.mxu0
    %v243 = vadd.f32 %v202, %v242
    %244 = vdwg.mxu0
    %v245 = vmax.f32 %v223, 0.0
    %v246 = vmax.f32 %v243, 0.0
    %v247 = vld [vmem:[#allocation8] sm:$0xff]
    %v248 = vld [vmem:[#allocation8 + $0x8] sm:$0xff]
    %v249 = vld [vmem:[#allocation8 + $0x10] sm:$0xff]
    %v250 = vld [vmem:[#allocation8 + $0x18] sm:$0xff]
    %v251 = vld [vmem:[#allocation8 + $0x20] sm:$0xff]
    %v252 = vld [vmem:[#allocation8 + $0x28] sm:$0xff]
    %v253 = vld [vmem:[#allocation8 + $0x30] sm:$0xff]
    %v254 = vld [vmem:[#allocation8 + $0x38] sm:$0xff]
    %v255 = vld [vmem:[#allocation8 + $0x40] sm:$0xff]
    %v256 = vld [vmem:[#allocation8 + $0x48] sm:$0xff]
    %v257 = vld [vmem:[#allocation8 + $0x50] sm:$0xff]
    %v258 = vld [vmem:[#allocation8 + $0x58] sm:$0xff]
    %v259 = vld [vmem:[#allocation8 + $0x60] sm:$0xff]
    %v260 = vld [vmem:[#allocation8 + $0x68] sm:$0xff]
    %v261 = vld [vmem:[#allocation8 + $0x70] sm:$0xff]
    %v262 = vld [vmem:[#allocation8 + $0x78] sm:$0xff]
    %v263 = vld [vmem:[#allocation8 + $0x80] sm:$0xff]
    %v264 = vld [vmem:[#allocation8 + $0x88] sm:$0xff]
    %v265 = vld [vmem:[#allocation8 + $0x90] sm:$0xff]
    %v266 = vld [vmem:[#allocation8 + $0x98] sm:$0xff]
    %v267 = vld [vmem:[#allocation8 + $0xa0] sm:$0xff]
    %v268 = vld [vmem:[#allocation8 + $0xa8] sm:$0xff]
    %v269 = vld [vmem:[#allocation8 + $0xb0] sm:$0xff]
    %v270 = vld [vmem:[#allocation8 + $0xb8] sm:$0xff]
    %v271 = vld [vmem:[#allocation8 + $0xc0] sm:$0xff]
    %v272 = vld [vmem:[#allocation8 + $0xc8] sm:$0xff]
    %v273 = vld [vmem:[#allocation8 + $0xd0] sm:$0xff]
    %v274 = vld [vmem:[#allocation8 + $0xd8] sm:$0xff]
    %v275 = vld [vmem:[#allocation8 + $0xe0] sm:$0xff]
    %v276 = vld [vmem:[#allocation8 + $0xe8] sm:$0xff]
    %v277 = vld [vmem:[#allocation8 + $0xf0] sm:$0xff]
    %v278 = vld [vmem:[#allocation8 + $0xf8] sm:$0xff]
    %v279 = vld [vmem:[#allocation8 + $0x100] sm:$0xff]
    %v280 = vld [vmem:[#allocation8 + $0x108] sm:$0xff]
    %v281 = vld [vmem:[#allocation8 + $0x110] sm:$0xff]
    %v282 = vld [vmem:[#allocation8 + $0x118] sm:$0xff]
    %v283 = vld [vmem:[#allocation8 + $0x120] sm:$0xff]
    %v284 = vld [vmem:[#allocation8 + $0x128] sm:$0xff]
    %v285 = vld [vmem:[#allocation8 + $0x130] sm:$0xff]
    %v286 = vld [vmem:[#allocation8 + $0x138] sm:$0xff]
    %v287 = vld [vmem:[#allocation8 + $0x140] sm:$0xff]
    %v288 = vld [vmem:[#allocation8 + $0x148] sm:$0xff]
    %v289 = vld [vmem:[#allocation8 + $0x150] sm:$0xff]
    %v290 = vld [vmem:[#allocation8 + $0x158] sm:$0xff]
    %v291 = vld [vmem:[#allocation8 + $0x160] sm:$0xff]
    %v292 = vld [vmem:[#allocation8 + $0x168] sm:$0xff]
    %v293 = vld [vmem:[#allocation8 + $0x170] sm:$0xff]
    %v294 = vld [vmem:[#allocation8 + $0x178] sm:$0xff]
    %v295 = vld [vmem:[#allocation8 + $0x180] sm:$0xff]
    %v296 = vld [vmem:[#allocation8 + $0x188] sm:$0xff]
    %v297 = vld [vmem:[#allocation8 + $0x190] sm:$0xff]
    %v298 = vld [vmem:[#allocation8 + $0x198] sm:$0xff]
    %v299 = vld [vmem:[#allocation8 + $0x1a0] sm:$0xff]
    %v300 = vld [vmem:[#allocation8 + $0x1a8] sm:$0xff]
    %v301 = vld [vmem:[#allocation8 + $0x1b0] sm:$0xff]
    %v302 = vld [vmem:[#allocation8 + $0x1b8] sm:$0xff]
    %v303 = vld [vmem:[#allocation8 + $0x1c0] sm:$0xff]
    %v304 = vld [vmem:[#allocation8 + $0x1c8] sm:$0xff]
    %v305 = vld [vmem:[#allocation8 + $0x1d0] sm:$0xff]
    %v306 = vld [vmem:[#allocation8 + $0x1d8] sm:$0xff]
    %v307 = vld [vmem:[#allocation8 + $0x1e0] sm:$0xff]
    %v308 = vld [vmem:[#allocation8 + $0x1e8] sm:$0xff]
    %v309 = vld [vmem:[#allocation8 + $0x1f0] sm:$0xff]
    %v310 = vld [vmem:[#allocation8 + $0x1f8] sm:$0xff]
    %v311 = vld [vmem:[%s4] sm:$0x3]
    %v313 = vperm.slane %v311, 0
    %v314 = vperm.slane %v311, 1
    %317 = vmatpush.msra.mxu0 %v277
    %318 = vmatpush.msra.mxu0 %v275
    %319 = vmatpush.msra.mxu0 %v273
    %320 = vmatpush.msra.mxu0 %v271
    %321 = vmatpush.msra.mxu0 %v269
    %322 = vmatpush.msra.mxu0 %v267
    %323 = vmatpush.msra.mxu0 %v265
    %324 = vmatpush.msra.mxu0 %v263
    %325 = vmatpush.msra.mxu0 %v261
    %326 = vmatpush.msra.mxu0 %v259
    %327 = vmatpush.msra.mxu0 %v257
    %328 = vmatpush.msra.mxu0 %v255
    %329 = vmatpush.msra.mxu0 %v253
    %330 = vmatpush.msra.mxu0 %v251
    %331 = vmatpush.msra.mxu0 %v249
    %332 = vmatpush.msra.mxu0 %v247
    %333 = vmatmul.f32.gmra.mxu0 %v245
    %v334 = vpop.f32.mrf.mxu0
    %v335 = vadd.f32 %v313, %v334
    %336 = vdwg.mxu0
    %337 = vmatpush.msra.mxu0 %v309
    %338 = vmatpush.msra.mxu0 %v307
    %339 = vmatpush.msra.mxu0 %v305
    %340 = vmatpush.msra.mxu0 %v303
    %341 = vmatpush.msra.mxu0 %v301
    %342 = vmatpush.msra.mxu0 %v299
    %343 = vmatpush.msra.mxu0 %v297
    %344 = vmatpush.msra.mxu0 %v295
    %345 = vmatpush.msra.mxu0 %v293
    %346 = vmatpush.msra.mxu0 %v291
    %347 = vmatpush.msra.mxu0 %v289
    %348 = vmatpush.msra.mxu0 %v287
    %349 = vmatpush.msra.mxu0 %v285
    %350 = vmatpush.msra.mxu0 %v283
    %351 = vmatpush.msra.mxu0 %v281
    %352 = vmatpush.msra.mxu0 %v279
    %353 = vmatmul.f32.gmra.mxu0 %v246
    %v354 = vpop.f32.mrf.mxu0
    %v355 = vadd.f32 %v335, %v354
    %356 = vdwg.mxu0
    %357 = vmatpush.msra.mxu0 %v278
    %358 = vmatpush.msra.mxu0 %v276
    %359 = vmatpush.msra.mxu0 %v274
    %360 = vmatpush.msra.mxu0 %v272
    %361 = vmatpush.msra.mxu0 %v270
    %362 = vmatpush.msra.mxu0 %v268
    %363 = vmatpush.msra.mxu0 %v266
    %364 = vmatpush.msra.mxu0 %v264
    %365 = vmatpush.msra.mxu0 %v262
    %366 = vmatpush.msra.mxu0 %v260
    %367 = vmatpush.msra.mxu0 %v258
    %368 = vmatpush.msra.mxu0 %v256
    %369 = vmatpush.msra.mxu0 %v254
    %370 = vmatpush.msra.mxu0 %v252
    %371 = vmatpush.msra.mxu0 %v250
    %372 = vmatpush.msra.mxu0 %v248
    %373 = vmatmul.f32.gmra.mxu0 %v245
    %v374 = vpop.f32.mrf.mxu0
    %v375 = vadd.f32 %v314, %v374
    %376 = vdwg.mxu0
    %377 = vmatpush.msra.mxu0 %v310
    %378 = vmatpush.msra.mxu0 %v308
    %379 = vmatpush.msra.mxu0 %v306
    %380 = vmatpush.msra.mxu0 %v304
    %381 = vmatpush.msra.mxu0 %v302
    %382 = vmatpush.msra.mxu0 %v300
    %383 = vmatpush.msra.mxu0 %v298
    %384 = vmatpush.msra.mxu0 %v296
    %385 = vmatpush.msra.mxu0 %v294
    %386 = vmatpush.msra.mxu0 %v292
    %387 = vmatpush.msra.mxu0 %v290
    %388 = vmatpush.msra.mxu0 %v288
    %389 = vmatpush.msra.mxu0 %v286
    %390 = vmatpush.msra.mxu0 %v284
    %391 = vmatpush.msra.mxu0 %v282
    %392 = vmatpush.msra.mxu0 %v280
    %393 = vmatmul.f32.gmra.mxu0 %v246
    %v394 = vpop.f32.mrf.mxu0
    %v395 = vadd.f32 %v375, %v394
    %396 = vdwg.mxu0
    %v397 = vmax.f32 %v355, 0.0
    %v398 = vmax.f32 %v395, 0.0
    %v399 = vld [vmem:[#allocation10] sm:$0xff]
    %v400 = vld [vmem:[#allocation10 + $0x8] sm:$0xff]
    %v401 = vld [vmem:[#allocation10 + $0x10] sm:$0xff]
    %v402 = vld [vmem:[#allocation10 + $0x18] sm:$0xff]
    %v403 = vld [vmem:[#allocation10 + $0x20] sm:$0xff]
    %v404 = vld [vmem:[#allocation10 + $0x28] sm:$0xff]
    %v405 = vld [vmem:[#allocation10 + $0x30] sm:$0xff]
    %v406 = vld [vmem:[#allocation10 + $0x38] sm:$0xff]
    %v407 = vld [vmem:[#allocation10 + $0x40] sm:$0xff]
    %v408 = vld [vmem:[#allocation10 + $0x48] sm:$0xff]
    %v409 = vld [vmem:[#allocation10 + $0x50] sm:$0xff]
    %v410 = vld [vmem:[#allocation10 + $0x58] sm:$0xff]
    %v411 = vld [vmem:[#allocation10 + $0x60] sm:$0xff]
    %v412 = vld [vmem:[#allocation10 + $0x68] sm:$0xff]
    %v413 = vld [vmem:[#allocation10 + $0x70] sm:$0xff]
    %v414 = vld [vmem:[#allocation10 + $0x78] sm:$0xff]
    %v415 = vld [vmem:[#allocation10 + $0x80] sm:$0xff]
    %v416 = vld [vmem:[#allocation10 + $0x88] sm:$0xff]
    %v417 = vld [vmem:[#allocation10 + $0x90] sm:$0xff]
    %v418 = vld [vmem:[#allocation10 + $0x98] sm:$0xff]
    %v419 = vld [vmem:[#allocation10 + $0xa0] sm:$0xff]
    %v420 = vld [vmem:[#allocation10 + $0xa8] sm:$0xff]
    %v421 = vld [vmem:[#allocation10 + $0xb0] sm:$0xff]
    %v422 = vld [vmem:[#allocation10 + $0xb8] sm:$0xff]
    %v423 = vld [vmem:[#allocation10 + $0xc0] sm:$0xff]
    %v424 = vld [vmem:[#allocation10 + $0xc8] sm:$0xff]
    %v425 = vld [vmem:[#allocation10 + $0xd0] sm:$0xff]
    %v426 = vld [vmem:[#allocation10 + $0xd8] sm:$0xff]
    %v427 = vld [vmem:[#allocation10 + $0xe0] sm:$0xff]
    %v428 = vld [vmem:[#allocation10 + $0xe8] sm:$0xff]
    %v429 = vld [vmem:[#allocation10 + $0xf0] sm:$0xff]
    %v430 = vld [vmem:[#allocation10 + $0xf8] sm:$0xff]
    %v431 = vld [vmem:[#allocation10 + $0x100] sm:$0xff]
    %v432 = vld [vmem:[#allocation10 + $0x108] sm:$0xff]
    %v433 = vld [vmem:[#allocation10 + $0x110] sm:$0xff]
    %v434 = vld [vmem:[#allocation10 + $0x118] sm:$0xff]
    %v435 = vld [vmem:[#allocation10 + $0x120] sm:$0xff]
    %v436 = vld [vmem:[#allocation10 + $0x128] sm:$0xff]
    %v437 = vld [vmem:[#allocation10 + $0x130] sm:$0xff]
    %v438 = vld [vmem:[#allocation10 + $0x138] sm:$0xff]
    %v439 = vld [vmem:[#allocation10 + $0x140] sm:$0xff]
    %v440 = vld [vmem:[#allocation10 + $0x148] sm:$0xff]
    %v441 = vld [vmem:[#allocation10 + $0x150] sm:$0xff]
    %v442 = vld [vmem:[#allocation10 + $0x158] sm:$0xff]
    %v443 = vld [vmem:[#allocation10 + $0x160] sm:$0xff]
    %v444 = vld [vmem:[#allocation10 + $0x168] sm:$0xff]
    %v445 = vld [vmem:[#allocation10 + $0x170] sm:$0xff]
    %v446 = vld [vmem:[#allocation10 + $0x178] sm:$0xff]
    %v447 = vld [vmem:[#allocation10 + $0x180] sm:$0xff]
    %v448 = vld [vmem:[#allocation10 + $0x188] sm:$0xff]
    %v449 = vld [vmem:[#allocation10 + $0x190] sm:$0xff]
    %v450 = vld [vmem:[#allocation10 + $0x198] sm:$0xff]
    %v451 = vld [vmem:[#allocation10 + $0x1a0] sm:$0xff]
    %v452 = vld [vmem:[#allocation10 + $0x1a8] sm:$0xff]
    %v453 = vld [vmem:[#allocation10 + $0x1b0] sm:$0xff]
    %v454 = vld [vmem:[#allocation10 + $0x1b8] sm:$0xff]
    %v455 = vld [vmem:[#allocation10 + $0x1c0] sm:$0xff]
    %v456 = vld [vmem:[#allocation10 + $0x1c8] sm:$0xff]
    %v457 = vld [vmem:[#allocation10 + $0x1d0] sm:$0xff]
    %v458 = vld [vmem:[#allocation10 + $0x1d8] sm:$0xff]
    %v459 = vld [vmem:[#allocation10 + $0x1e0] sm:$0xff]
    %v460 = vld [vmem:[#allocation10 + $0x1e8] sm:$0xff]
    %v461 = vld [vmem:[#allocation10 + $0x1f0] sm:$0xff]
    %v462 = vld [vmem:[#allocation10 + $0x1f8] sm:$0xff]
    %v463 = vld [vmem:[%s6] sm:$0x3]
    %v465 = vperm.slane %v463, 0
    %v466 = vperm.slane %v463, 1
    %469 = vmatpush.msra.mxu0 %v429
    %470 = vmatpush.msra.mxu0 %v427
    %471 = vmatpush.msra.mxu0 %v425
    %472 = vmatpush.msra.mxu0 %v423
    %473 = vmatpush.msra.mxu0 %v421
    %474 = vmatpush.msra.mxu0 %v419
    %475 = vmatpush.msra.mxu0 %v417
    %476 = vmatpush.msra.mxu0 %v415
    %477 = vmatpush.msra.mxu0 %v413
    %478 = vmatpush.msra.mxu0 %v411
    %479 = vmatpush.msra.mxu0 %v409
    %480 = vmatpush.msra.mxu0 %v407
    %481 = vmatpush.msra.mxu0 %v405
    %482 = vmatpush.msra.mxu0 %v403
    %483 = vmatpush.msra.mxu0 %v401
    %484 = vmatpush.msra.mxu0 %v399
    %485 = vmatmul.f32.gmra.mxu0 %v397
    %v486 = vpop.f32.mrf.mxu0
    %v487 = vadd.f32 %v465, %v486
    %488 = vdwg.mxu0
    %489 = vmatpush.msra.mxu0 %v461
    %490 = vmatpush.msra.mxu0 %v459
    %491 = vmatpush.msra.mxu0 %v457
    %492 = vmatpush.msra.mxu0 %v455
    %493 = vmatpush.msra.mxu0 %v453
    %494 = vmatpush.msra.mxu0 %v451
    %495 = vmatpush.msra.mxu0 %v449
    %496 = vmatpush.msra.mxu0 %v447
    %497 = vmatpush.msra.mxu0 %v445
    %498 = vmatpush.msra.mxu0 %v443
    %499 = vmatpush.msra.mxu0 %v441
    %500 = vmatpush.msra.mxu0 %v439
    %501 = vmatpush.msra.mxu0 %v437
    %502 = vmatpush.msra.mxu0 %v435
    %503 = vmatpush.msra.mxu0 %v433
    %504 = vmatpush.msra.mxu0 %v431
    %505 = vmatmul.f32.gmra.mxu0 %v398
    %v506 = vpop.f32.mrf.mxu0
    %v507 = vadd.f32 %v487, %v506
    %508 = vdwg.mxu0
    %509 = vmatpush.msra.mxu0 %v430
    %510 = vmatpush.msra.mxu0 %v428
    %511 = vmatpush.msra.mxu0 %v426
    %512 = vmatpush.msra.mxu0 %v424
    %513 = vmatpush.msra.mxu0 %v422
    %514 = vmatpush.msra.mxu0 %v420
    %515 = vmatpush.msra.mxu0 %v418
    %516 = vmatpush.msra.mxu0 %v416
    %517 = vmatpush.msra.mxu0 %v414
    %518 = vmatpush.msra.mxu0 %v412
    %519 = vmatpush.msra.mxu0 %v410
    %520 = vmatpush.msra.mxu0 %v408
    %521 = vmatpush.msra.mxu0 %v406
    %522 = vmatpush.msra.mxu0 %v404
    %523 = vmatpush.msra.mxu0 %v402
    %524 = vmatpush.msra.mxu0 %v400
    %525 = vmatmul.f32.gmra.mxu0 %v397
    %v526 = vpop.f32.mrf.mxu0
    %v527 = vadd.f32 %v466, %v526
    %528 = vdwg.mxu0
    %529 = vmatpush.msra.mxu0 %v462
    %530 = vmatpush.msra.mxu0 %v460
    %531 = vmatpush.msra.mxu0 %v458
    %532 = vmatpush.msra.mxu0 %v456
    %533 = vmatpush.msra.mxu0 %v454
    %534 = vmatpush.msra.mxu0 %v452
    %535 = vmatpush.msra.mxu0 %v450
    %536 = vmatpush.msra.mxu0 %v448
    %537 = vmatpush.msra.mxu0 %v446
    %538 = vmatpush.msra.mxu0 %v444
    %539 = vmatpush.msra.mxu0 %v442
    %540 = vmatpush.msra.mxu0 %v440
    %541 = vmatpush.msra.mxu0 %v438
    %542 = vmatpush.msra.mxu0 %v436
    %543 = vmatpush.msra.mxu0 %v434
    %544 = vmatpush.msra.mxu0 %v432
    %545 = vmatmul.f32.gmra.mxu0 %v398
    %v546 = vpop.f32.mrf.mxu0
    %v547 = vadd.f32 %v527, %v546
    %548 = vdwg.mxu0
    %v549 = vmax.f32 %v507, 0.0
    %v550 = vmax.f32 %v547, 0.0
    %v551 = vld [vmem:[#allocation11] sm:$0xff]
    %v552 = vld [vmem:[#allocation11 + $0x8] sm:$0xff]
    %v553 = vld [vmem:[#allocation11 + $0x10] sm:$0xff]
    %v554 = vld [vmem:[#allocation11 + $0x18] sm:$0xff]
    %v555 = vld [vmem:[#allocation11 + $0x20] sm:$0xff]
    %v556 = vld [vmem:[#allocation11 + $0x28] sm:$0xff]
    %v557 = vld [vmem:[#allocation11 + $0x30] sm:$0xff]
    %v558 = vld [vmem:[#allocation11 + $0x38] sm:$0xff]
    %v559 = vld [vmem:[#allocation11 + $0x40] sm:$0xff]
    %v560 = vld [vmem:[#allocation11 + $0x48] sm:$0xff]
    %v561 = vld [vmem:[#allocation11 + $0x50] sm:$0xff]
    %v562 = vld [vmem:[#allocation11 + $0x58] sm:$0xff]
    %v563 = vld [vmem:[#allocation11 + $0x60] sm:$0xff]
    %v564 = vld [vmem:[#allocation11 + $0x68] sm:$0xff]
    %v565 = vld [vmem:[#allocation11 + $0x70] sm:$0xff]
    %v566 = vld [vmem:[#allocation11 + $0x78] sm:$0xff]
    %v567 = vld [vmem:[#allocation11 + $0x80] sm:$0xff]
    %v568 = vld [vmem:[#allocation11 + $0x88] sm:$0xff]
    %v569 = vld [vmem:[#allocation11 + $0x90] sm:$0xff]
    %v570 = vld [vmem:[#allocation11 + $0x98] sm:$0xff]
    %v571 = vld [vmem:[#allocation11 + $0xa0] sm:$0xff]
    %v572 = vld [vmem:[#allocation11 + $0xa8] sm:$0xff]
    %v573 = vld [vmem:[#allocation11 + $0xb0] sm:$0xff]
    %v574 = vld [vmem:[#allocation11 + $0xb8] sm:$0xff]
    %v575 = vld [vmem:[#allocation11 + $0xc0] sm:$0xff]
    %v576 = vld [vmem:[#allocation11 + $0xc8] sm:$0xff]
    %v577 = vld [vmem:[#allocation11 + $0xd0] sm:$0xff]
    %v578 = vld [vmem:[#allocation11 + $0xd8] sm:$0xff]
    %v579 = vld [vmem:[#allocation11 + $0xe0] sm:$0xff]
    %v580 = vld [vmem:[#allocation11 + $0xe8] sm:$0xff]
    %v581 = vld [vmem:[#allocation11 + $0xf0] sm:$0xff]
    %v582 = vld [vmem:[#allocation11 + $0xf8] sm:$0xff]
    %v583 = vld [vmem:[#allocation11 + $0x100] sm:$0xff]
    %v584 = vld [vmem:[#allocation11 + $0x108] sm:$0xff]
    %v585 = vld [vmem:[#allocation11 + $0x110] sm:$0xff]
    %v586 = vld [vmem:[#allocation11 + $0x118] sm:$0xff]
    %v587 = vld [vmem:[#allocation11 + $0x120] sm:$0xff]
    %v588 = vld [vmem:[#allocation11 + $0x128] sm:$0xff]
    %v589 = vld [vmem:[#allocation11 + $0x130] sm:$0xff]
    %v590 = vld [vmem:[#allocation11 + $0x138] sm:$0xff]
    %v591 = vld [vmem:[#allocation11 + $0x140] sm:$0xff]
    %v592 = vld [vmem:[#allocation11 + $0x148] sm:$0xff]
    %v593 = vld [vmem:[#allocation11 + $0x150] sm:$0xff]
    %v594 = vld [vmem:[#allocation11 + $0x158] sm:$0xff]
    %v595 = vld [vmem:[#allocation11 + $0x160] sm:$0xff]
    %v596 = vld [vmem:[#allocation11 + $0x168] sm:$0xff]
    %v597 = vld [vmem:[#allocation11 + $0x170] sm:$0xff]
    %v598 = vld [vmem:[#allocation11 + $0x178] sm:$0xff]
    %v599 = vld [vmem:[#allocation11 + $0x180] sm:$0xff]
    %v600 = vld [vmem:[#allocation11 + $0x188] sm:$0xff]
    %v601 = vld [vmem:[#allocation11 + $0x190] sm:$0xff]
    %v602 = vld [vmem:[#allocation11 + $0x198] sm:$0xff]
    %v603 = vld [vmem:[#allocation11 + $0x1a0] sm:$0xff]
    %v604 = vld [vmem:[#allocation11 + $0x1a8] sm:$0xff]
    %v605 = vld [vmem:[#allocation11 + $0x1b0] sm:$0xff]
    %v606 = vld [vmem:[#allocation11 + $0x1b8] sm:$0xff]
    %v607 = vld [vmem:[#allocation11 + $0x1c0] sm:$0xff]
    %v608 = vld [vmem:[#allocation11 + $0x1c8] sm:$0xff]
    %v609 = vld [vmem:[#allocation11 + $0x1d0] sm:$0xff]
    %v610 = vld [vmem:[#allocation11 + $0x1d8] sm:$0xff]
    %v611 = vld [vmem:[#allocation11 + $0x1e0] sm:$0xff]
    %v612 = vld [vmem:[#allocation11 + $0x1e8] sm:$0xff]
    %v613 = vld [vmem:[#allocation11 + $0x1f0] sm:$0xff]
    %v614 = vld [vmem:[#allocation11 + $0x1f8] sm:$0xff]
    %v615 = vld [vmem:[%s8] sm:$0x3]
    %v617 = vperm.slane %v615, 0
    %v618 = vperm.slane %v615, 1
    %621 = vmatpush.msra.mxu0 %v581
    %622 = vmatpush.msra.mxu0 %v579
    %623 = vmatpush.msra.mxu0 %v577
    %624 = vmatpush.msra.mxu0 %v575
    %625 = vmatpush.msra.mxu0 %v573
    %626 = vmatpush.msra.mxu0 %v571
    %627 = vmatpush.msra.mxu0 %v569
    %628 = vmatpush.msra.mxu0 %v567
    %629 = vmatpush.msra.mxu0 %v565
    %630 = vmatpush.msra.mxu0 %v563
    %631 = vmatpush.msra.mxu0 %v561
    %632 = vmatpush.msra.mxu0 %v559
    %633 = vmatpush.msra.mxu0 %v557
    %634 = vmatpush.msra.mxu0 %v555
    %635 = vmatpush.msra.mxu0 %v553
    %636 = vmatpush.msra.mxu0 %v551
    %637 = vmatmul.f32.gmra.mxu0 %v549
    %v638 = vpop.f32.mrf.mxu0
    %v639 = vadd.f32 %v617, %v638
    %640 = vdwg.mxu0
    %641 = vmatpush.msra.mxu0 %v613
    %642 = vmatpush.msra.mxu0 %v611
    %643 = vmatpush.msra.mxu0 %v609
    %644 = vmatpush.msra.mxu0 %v607
    %645 = vmatpush.msra.mxu0 %v605
    %646 = vmatpush.msra.mxu0 %v603
    %647 = vmatpush.msra.mxu0 %v601
    %648 = vmatpush.msra.mxu0 %v599
    %649 = vmatpush.msra.mxu0 %v597
    %650 = vmatpush.msra.mxu0 %v595
    %651 = vmatpush.msra.mxu0 %v593
    %652 = vmatpush.msra.mxu0 %v591
    %653 = vmatpush.msra.mxu0 %v589
    %654 = vmatpush.msra.mxu0 %v587
    %655 = vmatpush.msra.mxu0 %v585
    %656 = vmatpush.msra.mxu0 %v583
    %657 = vmatmul.f32.gmra.mxu0 %v550
    %v658 = vpop.f32.mrf.mxu0
    %v659 = vadd.f32 %v639, %v658
    %660 = vdwg.mxu0
    %661 = vmatpush.msra.mxu0 %v582
    %662 = vmatpush.msra.mxu0 %v580
    %663 = vmatpush.msra.mxu0 %v578
    %664 = vmatpush.msra.mxu0 %v576
    %665 = vmatpush.msra.mxu0 %v574
    %666 = vmatpush.msra.mxu0 %v572
    %667 = vmatpush.msra.mxu0 %v570
    %668 = vmatpush.msra.mxu0 %v568
    %669 = vmatpush.msra.mxu0 %v566
    %670 = vmatpush.msra.mxu0 %v564
    %671 = vmatpush.msra.mxu0 %v562
    %672 = vmatpush.msra.mxu0 %v560
    %673 = vmatpush.msra.mxu0 %v558
    %674 = vmatpush.msra.mxu0 %v556
    %675 = vmatpush.msra.mxu0 %v554
    %676 = vmatpush.msra.mxu0 %v552
    %677 = vmatmul.f32.gmra.mxu0 %v549
    %v678 = vpop.f32.mrf.mxu0
    %v679 = vadd.f32 %v618, %v678
    %680 = vdwg.mxu0
    %681 = vmatpush.msra.mxu0 %v614
    %682 = vmatpush.msra.mxu0 %v612
    %683 = vmatpush.msra.mxu0 %v610
    %684 = vmatpush.msra.mxu0 %v608
    %685 = vmatpush.msra.mxu0 %v606
    %686 = vmatpush.msra.mxu0 %v604
    %687 = vmatpush.msra.mxu0 %v602
    %688 = vmatpush.msra.mxu0 %v600
    %689 = vmatpush.msra.mxu0 %v598
    %690 = vmatpush.msra.mxu0 %v596
    %691 = vmatpush.msra.mxu0 %v594
    %692 = vmatpush.msra.mxu0 %v592
    %693 = vmatpush.msra.mxu0 %v590
    %694 = vmatpush.msra.mxu0 %v588
    %695 = vmatpush.msra.mxu0 %v586
    %696 = vmatpush.msra.mxu0 %v584
    %697 = vmatmul.f32.gmra.mxu0 %v550
    %v698 = vpop.f32.mrf.mxu0
    %v699 = vadd.f32 %v679, %v698
    %700 = vdwg.mxu0
    %v701 = vmax.f32 %v659, 0.0
    %v702 = vmax.f32 %v699, 0.0
    %v703 = vld [vmem:[#allocation13] sm:$0xff]
    %v704 = vld [vmem:[#allocation13 + $0x8] sm:$0xff]
    %v705 = vld [vmem:[#allocation13 + $0x10] sm:$0xff]
    %v706 = vld [vmem:[#allocation13 + $0x18] sm:$0xff]
    %v707 = vld [vmem:[#allocation13 + $0x20] sm:$0xff]
    %v708 = vld [vmem:[#allocation13 + $0x28] sm:$0xff]
    %v709 = vld [vmem:[#allocation13 + $0x30] sm:$0xff]
    %v710 = vld [vmem:[#allocation13 + $0x38] sm:$0xff]
    %v711 = vld [vmem:[#allocation13 + $0x40] sm:$0xff]
    %v712 = vld [vmem:[#allocation13 + $0x48] sm:$0xff]
    %v713 = vld [vmem:[#allocation13 + $0x50] sm:$0xff]
    %v714 = vld [vmem:[#allocation13 + $0x58] sm:$0xff]
    %v715 = vld [vmem:[#allocation13 + $0x60] sm:$0xff]
    %v716 = vld [vmem:[#allocation13 + $0x68] sm:$0xff]
    %v717 = vld [vmem:[#allocation13 + $0x70] sm:$0xff]
    %v718 = vld [vmem:[#allocation13 + $0x78] sm:$0xff]
    %v719 = vld [vmem:[#allocation13 + $0x80] sm:$0xff]
    %v720 = vld [vmem:[#allocation13 + $0x88] sm:$0xff]
    %v721 = vld [vmem:[#allocation13 + $0x90] sm:$0xff]
    %v722 = vld [vmem:[#allocation13 + $0x98] sm:$0xff]
    %v723 = vld [vmem:[#allocation13 + $0xa0] sm:$0xff]
    %v724 = vld [vmem:[#allocation13 + $0xa8] sm:$0xff]
    %v725 = vld [vmem:[#allocation13 + $0xb0] sm:$0xff]
    %v726 = vld [vmem:[#allocation13 + $0xb8] sm:$0xff]
    %v727 = vld [vmem:[#allocation13 + $0xc0] sm:$0xff]
    %v728 = vld [vmem:[#allocation13 + $0xc8] sm:$0xff]
    %v729 = vld [vmem:[#allocation13 + $0xd0] sm:$0xff]
    %v730 = vld [vmem:[#allocation13 + $0xd8] sm:$0xff]
    %v731 = vld [vmem:[#allocation13 + $0xe0] sm:$0xff]
    %v732 = vld [vmem:[#allocation13 + $0xe8] sm:$0xff]
    %v733 = vld [vmem:[#allocation13 + $0xf0] sm:$0xff]
    %v734 = vld [vmem:[#allocation13 + $0xf8] sm:$0xff]
    %v735 = vld [vmem:[#allocation13 + $0x100] sm:$0xff]
    %v736 = vld [vmem:[#allocation13 + $0x108] sm:$0xff]
    %v737 = vld [vmem:[#allocation13 + $0x110] sm:$0xff]
    %v738 = vld [vmem:[#allocation13 + $0x118] sm:$0xff]
    %v739 = vld [vmem:[#allocation13 + $0x120] sm:$0xff]
    %v740 = vld [vmem:[#allocation13 + $0x128] sm:$0xff]
    %v741 = vld [vmem:[#allocation13 + $0x130] sm:$0xff]
    %v742 = vld [vmem:[#allocation13 + $0x138] sm:$0xff]
    %v743 = vld [vmem:[#allocation13 + $0x140] sm:$0xff]
    %v744 = vld [vmem:[#allocation13 + $0x148] sm:$0xff]
    %v745 = vld [vmem:[#allocation13 + $0x150] sm:$0xff]
    %v746 = vld [vmem:[#allocation13 + $0x158] sm:$0xff]
    %v747 = vld [vmem:[#allocation13 + $0x160] sm:$0xff]
    %v748 = vld [vmem:[#allocation13 + $0x168] sm:$0xff]
    %v749 = vld [vmem:[#allocation13 + $0x170] sm:$0xff]
    %v750 = vld [vmem:[#allocation13 + $0x178] sm:$0xff]
    %v751 = vld [vmem:[#allocation13 + $0x180] sm:$0xff]
    %v752 = vld [vmem:[#allocation13 + $0x188] sm:$0xff]
    %v753 = vld [vmem:[#allocation13 + $0x190] sm:$0xff]
    %v754 = vld [vmem:[#allocation13 + $0x198] sm:$0xff]
    %v755 = vld [vmem:[#allocation13 + $0x1a0] sm:$0xff]
    %v756 = vld [vmem:[#allocation13 + $0x1a8] sm:$0xff]
    %v757 = vld [vmem:[#allocation13 + $0x1b0] sm:$0xff]
    %v758 = vld [vmem:[#allocation13 + $0x1b8] sm:$0xff]
    %v759 = vld [vmem:[#allocation13 + $0x1c0] sm:$0xff]
    %v760 = vld [vmem:[#allocation13 + $0x1c8] sm:$0xff]
    %v761 = vld [vmem:[#allocation13 + $0x1d0] sm:$0xff]
    %v762 = vld [vmem:[#allocation13 + $0x1d8] sm:$0xff]
    %v763 = vld [vmem:[#allocation13 + $0x1e0] sm:$0xff]
    %v764 = vld [vmem:[#allocation13 + $0x1e8] sm:$0xff]
    %v765 = vld [vmem:[#allocation13 + $0x1f0] sm:$0xff]
    %v766 = vld [vmem:[#allocation13 + $0x1f8] sm:$0xff]
    %v767 = vld [vmem:[%s10] sm:$0x3]
    %v769 = vperm.slane %v767, 0
    %v770 = vperm.slane %v767, 1
    %773 = vmatpush.msra.mxu0 %v733
    %774 = vmatpush.msra.mxu0 %v731
    %775 = vmatpush.msra.mxu0 %v729
    %776 = vmatpush.msra.mxu0 %v727
    %777 = vmatpush.msra.mxu0 %v725
    %778 = vmatpush.msra.mxu0 %v723
    %779 = vmatpush.msra.mxu0 %v721
    %780 = vmatpush.msra.mxu0 %v719
    %781 = vmatpush.msra.mxu0 %v717
    %782 = vmatpush.msra.mxu0 %v715
    %783 = vmatpush.msra.mxu0 %v713
    %784 = vmatpush.msra.mxu0 %v711
    %785 = vmatpush.msra.mxu0 %v709
    %786 = vmatpush.msra.mxu0 %v707
    %787 = vmatpush.msra.mxu0 %v705
    %788 = vmatpush.msra.mxu0 %v703
    %789 = vmatmul.f32.gmra.mxu0 %v701
    %v790 = vpop.f32.mrf.mxu0
    %v791 = vadd.f32 %v769, %v790
    %792 = vdwg.mxu0
    %793 = vmatpush.msra.mxu0 %v765
    %794 = vmatpush.msra.mxu0 %v763
    %795 = vmatpush.msra.mxu0 %v761
    %796 = vmatpush.msra.mxu0 %v759
    %797 = vmatpush.msra.mxu0 %v757
    %798 = vmatpush.msra.mxu0 %v755
    %799 = vmatpush.msra.mxu0 %v753
    %800 = vmatpush.msra.mxu0 %v751
    %801 = vmatpush.msra.mxu0 %v749
    %802 = vmatpush.msra.mxu0 %v747
    %803 = vmatpush.msra.mxu0 %v745
    %804 = vmatpush.msra.mxu0 %v743
    %805 = vmatpush.msra.mxu0 %v741
    %806 = vmatpush.msra.mxu0 %v739
    %807 = vmatpush.msra.mxu0 %v737
    %808 = vmatpush.msra.mxu0 %v735
    %809 = vmatmul.f32.gmra.mxu0 %v702
    %v810 = vpop.f32.mrf.mxu0
    %v811 = vadd.f32 %v791, %v810
    %812 = vdwg.mxu0
    %813 = vmatpush.msra.mxu0 %v734
    %814 = vmatpush.msra.mxu0 %v732
    %815 = vmatpush.msra.mxu0 %v730
    %816 = vmatpush.msra.mxu0 %v728
    %817 = vmatpush.msra.mxu0 %v726
    %818 = vmatpush.msra.mxu0 %v724
    %819 = vmatpush.msra.mxu0 %v722
    %820 = vmatpush.msra.mxu0 %v720
    %821 = vmatpush.msra.mxu0 %v718
    %822 = vmatpush.msra.mxu0 %v716
    %823 = vmatpush.msra.mxu0 %v714
    %824 = vmatpush.msra.mxu0 %v712
    %825 = vmatpush.msra.mxu0 %v710
    %826 = vmatpush.msra.mxu0 %v708
    %827 = vmatpush.msra.mxu0 %v706
    %828 = vmatpush.msra.mxu0 %v704
    %829 = vmatmul.f32.gmra.mxu0 %v701
    %v830 = vpop.f32.mrf.mxu0
    %v831 = vadd.f32 %v770, %v830
    %832 = vdwg.mxu0
    %833 = vmatpush.msra.mxu0 %v766
    %834 = vmatpush.msra.mxu0 %v764
    %835 = vmatpush.msra.mxu0 %v762
    %836 = vmatpush.msra.mxu0 %v760
    %837 = vmatpush.msra.mxu0 %v758
    %838 = vmatpush.msra.mxu0 %v756
    %839 = vmatpush.msra.mxu0 %v754
    %840 = vmatpush.msra.mxu0 %v752
    %841 = vmatpush.msra.mxu0 %v750
    %842 = vmatpush.msra.mxu0 %v748
    %843 = vmatpush.msra.mxu0 %v746
    %844 = vmatpush.msra.mxu0 %v744
    %845 = vmatpush.msra.mxu0 %v742
    %846 = vmatpush.msra.mxu0 %v740
    %847 = vmatpush.msra.mxu0 %v738
    %848 = vmatpush.msra.mxu0 %v736
    %849 = vmatmul.f32.gmra.mxu0 %v702
    %v850 = vpop.f32.mrf.mxu0
    %v851 = vadd.f32 %v831, %v850
    %852 = vdwg.mxu0
    %v853 = vmax.f32 %v811, 0.0
    %v854 = vmax.f32 %v851, 0.0
    %v855 = vld [vmem:[#allocation14] sm:$0xff]
    %v856 = vld [vmem:[#allocation14 + $0x8] sm:$0xff]
    %v857 = vld [vmem:[#allocation14 + $0x10] sm:$0xff]
    %v858 = vld [vmem:[#allocation14 + $0x18] sm:$0xff]
    %v859 = vld [vmem:[#allocation14 + $0x20] sm:$0xff]
    %v860 = vld [vmem:[#allocation14 + $0x28] sm:$0xff]
    %v861 = vld [vmem:[#allocation14 + $0x30] sm:$0xff]
    %v862 = vld [vmem:[#allocation14 + $0x38] sm:$0xff]
    %v863 = vld [vmem:[#allocation14 + $0x40] sm:$0xff]
    %v864 = vld [vmem:[#allocation14 + $0x48] sm:$0xff]
    %v865 = vld [vmem:[#allocation14 + $0x50] sm:$0xff]
    %v866 = vld [vmem:[#allocation14 + $0x58] sm:$0xff]
    %v867 = vld [vmem:[#allocation14 + $0x60] sm:$0xff]
    %v868 = vld [vmem:[#allocation14 + $0x68] sm:$0xff]
    %v869 = vld [vmem:[#allocation14 + $0x70] sm:$0xff]
    %v870 = vld [vmem:[#allocation14 + $0x78] sm:$0xff]
    %v871 = vld [vmem:[#allocation14 + $0x80] sm:$0xff]
    %v872 = vld [vmem:[#allocation14 + $0x88] sm:$0xff]
    %v873 = vld [vmem:[#allocation14 + $0x90] sm:$0xff]
    %v874 = vld [vmem:[#allocation14 + $0x98] sm:$0xff]
    %v875 = vld [vmem:[#allocation14 + $0xa0] sm:$0xff]
    %v876 = vld [vmem:[#allocation14 + $0xa8] sm:$0xff]
    %v877 = vld [vmem:[#allocation14 + $0xb0] sm:$0xff]
    %v878 = vld [vmem:[#allocation14 + $0xb8] sm:$0xff]
    %v879 = vld [vmem:[#allocation14 + $0xc0] sm:$0xff]
    %v880 = vld [vmem:[#allocation14 + $0xc8] sm:$0xff]
    %v881 = vld [vmem:[#allocation14 + $0xd0] sm:$0xff]
    %v882 = vld [vmem:[#allocation14 + $0xd8] sm:$0xff]
    %v883 = vld [vmem:[#allocation14 + $0xe0] sm:$0xff]
    %v884 = vld [vmem:[#allocation14 + $0xe8] sm:$0xff]
    %v885 = vld [vmem:[#allocation14 + $0xf0] sm:$0xff]
    %v886 = vld [vmem:[#allocation14 + $0xf8] sm:$0xff]
    %v887 = vld [vmem:[%s12] sm:$0x1]
    %v889 = vperm.slane %v887, 0
    %891 = vmatpush.msra.mxu0 %v870
    %892 = vmatpush.msra.mxu0 %v869
    %893 = vmatpush.msra.mxu0 %v868
    %894 = vmatpush.msra.mxu0 %v867
    %895 = vmatpush.msra.mxu0 %v866
    %896 = vmatpush.msra.mxu0 %v865
    %897 = vmatpush.msra.mxu0 %v864
    %898 = vmatpush.msra.mxu0 %v863
    %899 = vmatpush.msra.mxu0 %v862
    %900 = vmatpush.msra.mxu0 %v861
    %901 = vmatpush.msra.mxu0 %v860
    %902 = vmatpush.msra.mxu0 %v859
    %903 = vmatpush.msra.mxu0 %v858
    %904 = vmatpush.msra.mxu0 %v857
    %905 = vmatpush.msra.mxu0 %v856
    %906 = vmatpush.msra.mxu0 %v855
    %907 = vmatmul.f32.gmra.mxu0 %v853
    %v908 = vpop.f32.mrf.mxu0
    %v909 = vadd.f32 %v889, %v908
    %910 = vdwg.mxu0
    %911 = vmatpush.msra.mxu0 %v886
    %912 = vmatpush.msra.mxu0 %v885
    %913 = vmatpush.msra.mxu0 %v884
    %914 = vmatpush.msra.mxu0 %v883
    %915 = vmatpush.msra.mxu0 %v882
    %916 = vmatpush.msra.mxu0 %v881
    %917 = vmatpush.msra.mxu0 %v880
    %918 = vmatpush.msra.mxu0 %v879
    %919 = vmatpush.msra.mxu0 %v878
    %920 = vmatpush.msra.mxu0 %v877
    %921 = vmatpush.msra.mxu0 %v876
    %922 = vmatpush.msra.mxu0 %v875
    %923 = vmatpush.msra.mxu0 %v874
    %924 = vmatpush.msra.mxu0 %v873
    %925 = vmatpush.msra.mxu0 %v872
    %926 = vmatpush.msra.mxu0 %v871
    %927 = vmatmul.f32.gmra.mxu0 %v854
    %v928 = vpop.f32.mrf.mxu0
    %v929 = vadd.f32 %v909, %v928
    %930 = vdwg.mxu0
    %931 = vst [vmem:[#allocation16] sm:$0xff] %v929
    // Predicated region
    $region86: #{tpu_custom_call.1} parent=1 // pred_check
      _
    $region87: #{tpu_custom_call.1} parent=1 // pred_check_branch
      %933 = sbr.rel (0) target = $region89
    $region88: #{tpu_custom_call.1} parent=1 // pred_region
      %935 = vsyncadd [#allocation4], 0
      %s937 = sshll.u32 [#allocation16], 4
      %s938 = int_to_ptr.vmem [resolvable:$true] %s937
      %s939 = sshll.u32 %s13, 4
      %s940 = int_to_ptr.hbm [resolvable:$true] %s939
      %942 = dma.vmem_to_hbm [thread:$0]  %s938, 128, %s940, [#allocation4]
    $region89: #{tpu_custom_call.1} parent=1 // pred_fallthru
      _
    // Predicated region
    $region90: #{tpu_custom_call.1} parent=1 // pred_check
      _
    $region91: #{tpu_custom_call.1} parent=1 // pred_check_branch
      %944 = sbr.rel (0) target = $region93
    $region92: #{tpu_custom_call.1} parent=1 // pred_region
      %946 = dma.done [#allocation4], 128
    $region93: #{tpu_custom_call.1} parent=1 // pred_fallthru
      _
    %947 = vsyncpa [#allocation3], 1
    %948 = vsyncpa [#allocation6], 1
    %949 = vsyncpa [#allocation9], 1
    %950 = vsyncpa [#allocation12], 1
    %951 = vsyncpa [#allocation15], 1
    %952 = vsyncpa [#allocation4], 1

</llo_original>
